<compile_context>
chip_gen: v5e
topology: v5e:2x2
jax: 0.10.0
libtpu: 0.0.40
codegen_flags: <defaults>
</compile_context>

<pallas_src>
import jax
import jax.numpy as jnp
from jax.experimental import pallas as pl
from jax.experimental.pallas import tpu as pltpu


def _mish(x):
    # mish(x) = x * tanh(softplus(x)) = x * n / (n + 2)  with  n = e^x (e^x + 2)
    # Single exp + divide; clamp the exp argument and guard large x in f32.
    e = jnp.exp(jnp.minimum(x, 20.0))
    n = e * (e + 2.0)
    return jnp.where(x > 20.0, x, x * n / (n + 2.0))


def conv_bn_mish(x_nchw, w_oihw, gamma, beta, mean, var, *, k=3, eps=1e-3):
    """Forward of Conv: Mish(BN(Conv2d(x))) with stride=1, padding=k//2, no bias."""
    N, Cin, H, W = x_nchw.shape
    Cout = w_oihw.shape[0]
    assert w_oihw.shape == (Cout, Cin, k, k)
    assert k % 2 == 1, "only odd kernel sizes (p = k//2) are supported"
    r = k // 2
    P = H * W
    NP = N * P                      # lane extent; multiple of 128 here (unmasked vst)
    KK = k * k
    Cin_pad = max(8, ((Cin + 7) // 8) * 8)     # align im2col K axis to 8 sublanes
    KKC = KK * Cin_pad

    # ---- fold inference-mode BN into the conv weight and a per-channel bias ----
    scale = gamma / jnp.sqrt(var + eps)
    bias = beta - mean * scale
    w_folded = w_oihw * scale[:, None, None, None]                    # (Cout,Cin,k,k)
    # im2col weight layout: K index = (dy*k + dx)*Cin_pad + ci  (zero-padded channels)
    w_t = jnp.transpose(w_folded, (0, 2, 3, 1))                       # (Cout,k,k,Cin)
    w_t = jnp.pad(w_t, ((0, 0), (0, 0), (0, 0), (0, Cin_pad - Cin)))
    w_mat = w_t.reshape(Cout, KKC).astype(jnp.float32)                # (Cout, KKC)
    b_col = bias.reshape(Cout, 1).astype(jnp.float32)

    # ---- per-tap validity masks for "same" padding (precomputed, static) ----
    hh = jnp.arange(H)[:, None]
    ww = jnp.arange(W)[None, :]
    masks = []
    for dy in range(k):
        for dx in range(k):
            valid = ((hh + dy - r >= 0) & (hh + dy - r < H) &
                     (ww + dx - r >= 0) & (ww + dx - r < W))
            masks.append(valid.reshape(P))
    mask = jnp.stack(masks, axis=0).astype(jnp.float32)               # (KK, P)
    mask_np = jnp.tile(mask, (1, N))                                  # (KK, N*P)

    # ---- lane-dense activation layout: (Cin_pad, N*P), channels zero-padded ----
    x3 = jnp.transpose(x_nchw, (1, 0, 2, 3)).reshape(Cin, N, P)
    x3 = jnp.pad(x3, ((0, Cin_pad - Cin), (0, 0), (0, 0)))
    x2 = x3.reshape(Cin_pad, NP).astype(jnp.float32)

    def kernel(x_ref, w_ref, b_ref, m_ref, o_ref, col_ref):
        # x_ref:   (Cin_pad, N*P)    activations, N*H*W on the 128-lane axis
        # w_ref:   (Cout, KK*Cin_pad) BN-scale-folded im2col weight
        # b_ref:   (Cout, 1)          BN bias
        # m_ref:   (KK, N*P)          per-tap edge masks (tiled over the batch)
        # o_ref:   (Cout, N*P)        output
        # col_ref: (KK*Cin_pad, N*P)  VMEM im2col buffer (fully overwritten)
        x = x_ref[...]
        m = m_ref[...]
        # Build the im2col buffer: each k*k tap is a lane-axis roll (XLU slot)
        # plus an edge mask; stores are 8-sublane aligned (static offsets).
        for dy in range(k):
            for dx in range(k):
                t = dy * k + dx
                off = (dy - r) * W + (dx - r)
                s = x if off == 0 else pltpu.roll(x, shift=(-off) % NP, axis=1)
                if not (dy == r and dx == r):             # center tap: always valid
                    s = s * m[t][None, :]
                col_ref[pl.ds(t * Cin_pad, Cin_pad), :] = s
        # One fused MXU matmul over the whole batch: (Cout, KKC) x (KKC, N*P)
        y = jnp.dot(w_ref[...], col_ref[...], preferred_element_type=jnp.float32)
        o_ref[...] = _mish(y + b_ref[...]).astype(o_ref.dtype)

    out2 = pl.pallas_call(
        kernel,
        out_shape=jax.ShapeDtypeStruct((Cout, NP), x_nchw.dtype),
        grid=(1,),                                        # whole batch in one step
        in_specs=[
            pl.BlockSpec((Cin_pad, NP), lambda i: (0, 0)),
            pl.BlockSpec((Cout, KKC), lambda i: (0, 0)),
            pl.BlockSpec((Cout, 1), lambda i: (0, 0)),
            pl.BlockSpec((KK, NP), lambda i: (0, 0)),
        ],
        out_specs=pl.BlockSpec((Cout, NP), lambda i: (0, 0)),
        scratch_shapes=[pltpu.VMEM((KKC, NP), jnp.float32)],
        compiler_params=pltpu.CompilerParams(
            dimension_semantics=("arbitrary",)),
    )(x2, w_mat, b_col, mask_np)

    # (Cout, N*P) -> (N, Cout, H, W); cheap XLA layout ops in the wrapper.
    return out2.reshape(Cout, N, H, W).transpose(1, 0, 2, 3)


def reference_conv_bn_mish(x_nchw, w_oihw, gamma, beta, mean, var, *, k=3, eps=1e-3):
    """Pure-JAX reference (lax conv + BN + canonical Mish)."""
    r = k // 2
    y = jax.lax.conv_general_dilated(
        x_nchw, w_oihw, window_strides=(1, 1), padding=((r, r), (r, r)),
        dimension_numbers=("NCHW", "OIHW", "NCHW"))
    scale = gamma / jnp.sqrt(var + eps)
    bias = beta - mean * scale
    y = y * scale[None, :, None, None] + bias[None, :, None, None]
    return y * jnp.tanh(jnp.logaddexp(y, 0.0))


if __name__ == "__main__":
    key = jax.random.PRNGKey(0)
    ks = jax.random.split(key, 6)

    # Conv(in_c=4, out_c=8, k=3, s=1, act='mish'); input (N=2, C=4, H=16, W=16)
    N, Cin, H, W = 2, 4, 16, 16
    Cout, k = 8, 3

    x = jax.random.normal(ks[0], (N, Cin, H, W), jnp.float32)
    # PyTorch Conv2d weight layout (out_c, in_c, k, k), bias=False
    w = jax.random.normal(ks[1], (Cout, Cin, k, k), jnp.float32) * 0.2
    # BatchNorm2d parameters / running stats (inference mode, eps=1e-3)
    gamma = jax.random.uniform(ks[2], (Cout,), jnp.float32, 0.5, 1.5)
    beta = jax.random.normal(ks[3], (Cout,), jnp.float32) * 0.1
    mean = jax.random.normal(ks[4], (Cout,), jnp.float32) * 0.1
    var = jax.random.uniform(ks[5], (Cout,), jnp.float32, 0.5, 1.5)

    out = jax.block_until_ready(conv_bn_mish(x, w, gamma, beta, mean, var, k=k))
    ref = jax.block_until_ready(reference_conv_bn_mish(x, w, gamma, beta, mean, var, k=k))

    assert out.shape == (N, Cout, H, W)
    import numpy as np
    np.testing.assert_allclose(np.asarray(out), np.asarray(ref),
                               rtol=1e-4, atol=1e-4)

    print("KERNEL_OK")
</pallas_src>

<mosaic_0001>
module attributes {stable_mosaic.version = 11 : i64} {
  func.func @kernel(%arg0: i32, %arg1: memref<8x512xf32, #tpu.memory_space<vmem>>, %arg2: memref<8x72xf32, #tpu.memory_space<vmem>>, %arg3: memref<8x1xf32, #tpu.memory_space<vmem>>, %arg4: memref<9x512xf32, #tpu.memory_space<vmem>>, %arg5: memref<8x512xf32, #tpu.memory_space<vmem>>, %arg6: memref<72x512xf32, #tpu.memory_space<vmem>>) attributes {dimension_semantics = [#tpu.dimension_semantics<arbitrary>], iteration_bounds = array<i64: 1>, scalar_prefetch = 0 : i64, scratch_operands = 1 : i64, tpu.core_type = #tpu.core_type<tc>, window_params = [{pipeline_mode = #tpu.pipeline_mode<synchronous>, transform_indices = @transform_0, window_bounds = array<i64: 8, 512>}, {pipeline_mode = #tpu.pipeline_mode<synchronous>, transform_indices = @transform_1, window_bounds = array<i64: 8, 72>}, {pipeline_mode = #tpu.pipeline_mode<synchronous>, transform_indices = @transform_2, window_bounds = array<i64: 8, 1>}, {pipeline_mode = #tpu.pipeline_mode<synchronous>, transform_indices = @transform_3, window_bounds = array<i64: 9, 512>}, {pipeline_mode = #tpu.pipeline_mode<synchronous>, transform_indices = @transform_4, window_bounds = array<i64: 8, 512>}]} {
    %c0 = arith.constant 0 : index
    %c0_0 = arith.constant 0 : index
    %0 = vector.load %arg1[%c0, %c0_0] : memref<8x512xf32, #tpu.memory_space<vmem>>, vector<8x512xf32>
    %c0_1 = arith.constant 0 : index
    %c0_2 = arith.constant 0 : index
    %1 = vector.load %arg4[%c0_1, %c0_2] : memref<9x512xf32, #tpu.memory_space<vmem>>, vector<9x512xf32>
    %c17_i32 = arith.constant 17 : i32
    %2 = tpu.dynamic_rotate %0 by %c17_i32 dim 1 : vector<8x512xf32>, i32 -> vector<8x512xf32>
    %3 = vector.extract_strided_slice %1 {offsets = [0, 0], sizes = [1, 512], strides = [1, 1]} : vector<9x512xf32> to vector<1x512xf32>
    %4 = vector.shape_cast %3 : vector<1x512xf32> to vector<512xf32>
    %5 = vector.shape_cast %4 : vector<512xf32> to vector<1x512xf32>
    %6 = vector.broadcast %5 : vector<1x512xf32> to vector<8x512xf32>
    %7 = arith.mulf %2, %6 : vector<8x512xf32>
    %c0_3 = arith.constant 0 : index
    %c0_4 = arith.constant 0 : index
    %8 = vector.load %arg6[%c0_3, %c0_4] : memref<72x512xf32, #tpu.memory_space<vmem>>, vector<8x512xf32>
    tpu.vector_store %arg6[%c0_3, %c0_4], %7 {strides = array<i32>} : memref<72x512xf32, #tpu.memory_space<vmem>>, vector<8x512xf32>,
    %c16_i32 = arith.constant 16 : i32
    %9 = tpu.dynamic_rotate %0 by %c16_i32 dim 1 : vector<8x512xf32>, i32 -> vector<8x512xf32>
    %10 = vector.extract_strided_slice %1 {offsets = [1, 0], sizes = [1, 512], strides = [1, 1]} : vector<9x512xf32> to vector<1x512xf32>
    %11 = vector.shape_cast %10 : vector<1x512xf32> to vector<512xf32>
    %12 = vector.shape_cast %11 : vector<512xf32> to vector<1x512xf32>
    %13 = vector.broadcast %12 : vector<1x512xf32> to vector<8x512xf32>
    %14 = arith.mulf %9, %13 : vector<8x512xf32>
    %c8 = arith.constant 8 : index
    %c0_5 = arith.constant 0 : index
    %15 = vector.load %arg6[%c8, %c0_5] : memref<72x512xf32, #tpu.memory_space<vmem>>, vector<8x512xf32>
    tpu.vector_store %arg6[%c8, %c0_5], %14 {strides = array<i32>} : memref<72x512xf32, #tpu.memory_space<vmem>>, vector<8x512xf32>,
    %c15_i32 = arith.constant 15 : i32
    %16 = tpu.dynamic_rotate %0 by %c15_i32 dim 1 : vector<8x512xf32>, i32 -> vector<8x512xf32>
    %17 = vector.extract_strided_slice %1 {offsets = [2, 0], sizes = [1, 512], strides = [1, 1]} : vector<9x512xf32> to vector<1x512xf32>
    %18 = vector.shape_cast %17 : vector<1x512xf32> to vector<512xf32>
    %19 = vector.shape_cast %18 : vector<512xf32> to vector<1x512xf32>
    %20 = vector.broadcast %19 : vector<1x512xf32> to vector<8x512xf32>
    %21 = arith.mulf %16, %20 : vector<8x512xf32>
    %c16 = arith.constant 16 : index
    %c0_6 = arith.constant 0 : index
    %22 = vector.load %arg6[%c16, %c0_6] : memref<72x512xf32, #tpu.memory_space<vmem>>, vector<8x512xf32>
    tpu.vector_store %arg6[%c16, %c0_6], %21 {strides = array<i32>} : memref<72x512xf32, #tpu.memory_space<vmem>>, vector<8x512xf32>,
    %c1_i32 = arith.constant 1 : i32
    %23 = tpu.dynamic_rotate %0 by %c1_i32 dim 1 : vector<8x512xf32>, i32 -> vector<8x512xf32>
    %24 = vector.extract_strided_slice %1 {offsets = [3, 0], sizes = [1, 512], strides = [1, 1]} : vector<9x512xf32> to vector<1x512xf32>
    %25 = vector.shape_cast %24 : vector<1x512xf32> to vector<512xf32>
    %26 = vector.shape_cast %25 : vector<512xf32> to vector<1x512xf32>
    %27 = vector.broadcast %26 : vector<1x512xf32> to vector<8x512xf32>
    %28 = arith.mulf %23, %27 : vector<8x512xf32>
    %c24 = arith.constant 24 : index
    %c0_7 = arith.constant 0 : index
    %29 = vector.load %arg6[%c24, %c0_7] : memref<72x512xf32, #tpu.memory_space<vmem>>, vector<8x512xf32>
    tpu.vector_store %arg6[%c24, %c0_7], %28 {strides = array<i32>} : memref<72x512xf32, #tpu.memory_space<vmem>>, vector<8x512xf32>,
    %c32 = arith.constant 32 : index
    %c0_8 = arith.constant 0 : index
    %30 = vector.load %arg6[%c32, %c0_8] : memref<72x512xf32, #tpu.memory_space<vmem>>, vector<8x512xf32>
    tpu.vector_store %arg6[%c32, %c0_8], %0 {strides = array<i32>} : memref<72x512xf32, #tpu.memory_space<vmem>>, vector<8x512xf32>,
    %c511_i32 = arith.constant 511 : i32
    %31 = tpu.dynamic_rotate %0 by %c511_i32 dim 1 : vector<8x512xf32>, i32 -> vector<8x512xf32>
    %32 = vector.extract_strided_slice %1 {offsets = [5, 0], sizes = [1, 512], strides = [1, 1]} : vector<9x512xf32> to vector<1x512xf32>
    %33 = vector.shape_cast %32 : vector<1x512xf32> to vector<512xf32>
    %34 = vector.shape_cast %33 : vector<512xf32> to vector<1x512xf32>
    %35 = vector.broadcast %34 : vector<1x512xf32> to vector<8x512xf32>
    %36 = arith.mulf %31, %35 : vector<8x512xf32>
    %c40 = arith.constant 40 : index
    %c0_9 = arith.constant 0 : index
    %37 = vector.load %arg6[%c40, %c0_9] : memref<72x512xf32, #tpu.memory_space<vmem>>, vector<8x512xf32>
    tpu.vector_store %arg6[%c40, %c0_9], %36 {strides = array<i32>} : memref<72x512xf32, #tpu.memory_space<vmem>>, vector<8x512xf32>,
    %c497_i32 = arith.constant 497 : i32
    %38 = tpu.dynamic_rotate %0 by %c497_i32 dim 1 : vector<8x512xf32>, i32 -> vector<8x512xf32>
    %39 = vector.extract_strided_slice %1 {offsets = [6, 0], sizes = [1, 512], strides = [1, 1]} : vector<9x512xf32> to vector<1x512xf32>
    %40 = vector.shape_cast %39 : vector<1x512xf32> to vector<512xf32>
    %41 = vector.shape_cast %40 : vector<512xf32> to vector<1x512xf32>
    %42 = vector.broadcast %41 : vector<1x512xf32> to vector<8x512xf32>
    %43 = arith.mulf %38, %42 : vector<8x512xf32>
    %c48 = arith.constant 48 : index
    %c0_10 = arith.constant 0 : index
    %44 = vector.load %arg6[%c48, %c0_10] : memref<72x512xf32, #tpu.memory_space<vmem>>, vector<8x512xf32>
    tpu.vector_store %arg6[%c48, %c0_10], %43 {strides = array<i32>} : memref<72x512xf32, #tpu.memory_space<vmem>>, vector<8x512xf32>,
    %c496_i32 = arith.constant 496 : i32
    %45 = tpu.dynamic_rotate %0 by %c496_i32 dim 1 : vector<8x512xf32>, i32 -> vector<8x512xf32>
    %46 = vector.extract_strided_slice %1 {offsets = [7, 0], sizes = [1, 512], strides = [1, 1]} : vector<9x512xf32> to vector<1x512xf32>
    %47 = vector.shape_cast %46 : vector<1x512xf32> to vector<512xf32>
    %48 = vector.shape_cast %47 : vector<512xf32> to vector<1x512xf32>
    %49 = vector.broadcast %48 : vector<1x512xf32> to vector<8x512xf32>
    %50 = arith.mulf %45, %49 : vector<8x512xf32>
    %c56 = arith.constant 56 : index
    %c0_11 = arith.constant 0 : index
    %51 = vector.load %arg6[%c56, %c0_11] : memref<72x512xf32, #tpu.memory_space<vmem>>, vector<8x512xf32>
    tpu.vector_store %arg6[%c56, %c0_11], %50 {strides = array<i32>} : memref<72x512xf32, #tpu.memory_space<vmem>>, vector<8x512xf32>,
    %c495_i32 = arith.constant 495 : i32
    %52 = tpu.dynamic_rotate %0 by %c495_i32 dim 1 : vector<8x512xf32>, i32 -> vector<8x512xf32>
    %53 = vector.extract_strided_slice %1 {offsets = [8, 0], sizes = [1, 512], strides = [1, 1]} : vector<9x512xf32> to vector<1x512xf32>
    %54 = vector.shape_cast %53 : vector<1x512xf32> to vector<512xf32>
    %55 = vector.shape_cast %54 : vector<512xf32> to vector<1x512xf32>
    %56 = vector.broadcast %55 : vector<1x512xf32> to vector<8x512xf32>
    %57 = arith.mulf %52, %56 : vector<8x512xf32>
    %c64 = arith.constant 64 : index
    %c0_12 = arith.constant 0 : index
    %58 = vector.load %arg6[%c64, %c0_12] : memref<72x512xf32, #tpu.memory_space<vmem>>, vector<8x512xf32>
    tpu.vector_store %arg6[%c64, %c0_12], %57 {strides = array<i32>} : memref<72x512xf32, #tpu.memory_space<vmem>>, vector<8x512xf32>,
    %c0_13 = arith.constant 0 : index
    %c0_14 = arith.constant 0 : index
    %59 = vector.load %arg2[%c0_13, %c0_14] : memref<8x72xf32, #tpu.memory_space<vmem>>, vector<8x72xf32>
    %c0_15 = arith.constant 0 : index
    %c0_16 = arith.constant 0 : index
    %60 = vector.load %arg6[%c0_15, %c0_16] : memref<72x512xf32, #tpu.memory_space<vmem>>, vector<72x512xf32>
    %cst = arith.constant dense<0.000000e+00> : vector<8x512xf32>
    %61 = tpu.matmul %59, %60, %cst {dimension_numbers = #tpu.dot_dimension_numbers<[1], [0], [0], [1], [0, 0, 1, 1], [], []>} : vector<8x72xf32>, vector<72x512xf32>, vector<8x512xf32> -> vector<8x512xf32>
    %c0_17 = arith.constant 0 : index
    %c0_18 = arith.constant 0 : index
    %62 = vector.load %arg3[%c0_17, %c0_18] : memref<8x1xf32, #tpu.memory_space<vmem>>, vector<8x1xf32>
    %63 = vector.broadcast %62 : vector<8x1xf32> to vector<8x512xf32>
    %64 = arith.addf %61, %63 : vector<8x512xf32>
    %cst_19 = arith.constant 2.000000e+01 : f32
    %65 = vector.broadcast %cst_19 : f32 to vector<8x512xf32>
    %66 = arith.minimumf %64, %65 : vector<8x512xf32>
    %67 = math.exp %66 : vector<8x512xf32>
    %cst_20 = arith.constant 2.000000e+00 : f32
    %68 = vector.broadcast %cst_20 : f32 to vector<8x512xf32>
    %69 = arith.addf %67, %68 : vector<8x512xf32>
    %70 = arith.mulf %67, %69 : vector<8x512xf32>
    %cst_21 = arith.constant 2.000000e+01 : f32
    %71 = vector.broadcast %cst_21 : f32 to vector<8x512xf32>
    %72 = arith.cmpf ogt, %64, %71 : vector<8x512xf32>
    %73 = arith.mulf %64, %70 : vector<8x512xf32>
    %cst_22 = arith.constant 2.000000e+00 : f32
    %74 = vector.broadcast %cst_22 : f32 to vector<8x512xf32>
    %75 = arith.addf %70, %74 : vector<8x512xf32>
    %76 = arith.divf %73, %75 : vector<8x512xf32>
    %77 = arith.select %72, %64, %76 : vector<8x512xi1>, vector<8x512xf32>
    %c0_23 = arith.constant 0 : index
    %c0_24 = arith.constant 0 : index
    %78 = vector.load %arg5[%c0_23, %c0_24] : memref<8x512xf32, #tpu.memory_space<vmem>>, vector<8x512xf32>
    tpu.vector_store %arg5[%c0_23, %c0_24], %77 {strides = array<i32>} : memref<8x512xf32, #tpu.memory_space<vmem>>, vector<8x512xf32>,
    return
  }
  func.func @transform_0(%arg0: i32) -> (i32, i32) {
    %c0_i32 = arith.constant 0 : i32
    %c0_i32_0 = arith.constant 0 : i32
    %c0_i32_1 = arith.constant 0 : i32
    return %c0_i32, %c0_i32_0 : i32, i32
  }
  func.func @transform_1(%arg0: i32) -> (i32, i32) {
    %c0_i32 = arith.constant 0 : i32
    %c0_i32_0 = arith.constant 0 : i32
    %c0_i32_1 = arith.constant 0 : i32
    return %c0_i32, %c0_i32_0 : i32, i32
  }
  func.func @transform_2(%arg0: i32) -> (i32, i32) {
    %c0_i32 = arith.constant 0 : i32
    %c0_i32_0 = arith.constant 0 : i32
    %c0_i32_1 = arith.constant 0 : i32
    return %c0_i32, %c0_i32_0 : i32, i32
  }
  func.func @transform_3(%arg0: i32) -> (i32, i32) {
    %c0_i32 = arith.constant 0 : i32
    %c0_i32_0 = arith.constant 0 : i32
    %c0_i32_1 = arith.constant 0 : i32
    return %c0_i32, %c0_i32_0 : i32, i32
  }
  func.func @transform_4(%arg0: i32) -> (i32, i32) {
    %c0_i32 = arith.constant 0 : i32
    %c0_i32_0 = arith.constant 0 : i32
    %c0_i32_1 = arith.constant 0 : i32
    return %c0_i32, %c0_i32_0 : i32, i32
  }
}

</mosaic_0001>

<llo_original>
// kernel: tpu_custom_call.1
$region0: #{tpu_custom_call.1}
  #allocation0 [shape = 'u32[]', space=smem, size = 0x4, offset = 0x4, fixed_abs, tag = 'smem constant byte address 0x4 - core index']
  #allocation1 [shape = 'u32[72,128]{1,0:T(1,128)}', space=vmem, size = 0x9000, scoped, tag = 'internal scratch']
  #allocation2 [shape = 'f32[72,512]{1,0:T(8,128)}', space=vmem, size = 0x24000, scoped, tag = 'scratch operand']
  %s0 = inlined_call_operand.hbm [shape: f32[8,512], index: 0, kind: input, shape index: {}]
  %s1 = inlined_call_operand.vmem [shape: f32[8,72], index: 1, kind: input, shape index: {}]
  %s2 = inlined_call_operand.vmem [shape: f32[8,1], index: 2, kind: input, shape index: {}]
  %s3 = inlined_call_operand.hbm [shape: f32[9,512], index: 3, kind: input, shape index: {}]
  %s4 = inlined_call_operand.hbm [shape: f32[8,512], index: 4, kind: output, shape index: {}]
  %s5 = sld [smem:[#allocation0]]
  $region34: #{tpu_custom_call.1} parent=0
    _
  %s7 = ssub.s32 1, %s5
  %s8 = scalar_select 0, %s7, %s5
  $region1: #{tpu_custom_call.1} parent=0
    #allocation3 [shape = 'u8[16384]{0}', space=vmem, size = 0x4000, scoped, tag = 'input window, operand 0, single buffered']
    #allocation4 [shape = 's32[1]{0}', space=sflag, size = 0x4, scoped, tag = 'scoped memory for tpu_custom_call.1']
    #allocation5 [shape = 's32[1]{0}', space=sflag, size = 0x4, scoped, tag = 'scoped memory for tpu_custom_call.1']
    #allocation6 [shape = 'u8[32768]{0}', space=vmem, size = 0x8000, scoped, tag = 'input window, operand 3, single buffered']
    #allocation7 [shape = 's32[1]{0}', space=sflag, size = 0x4, scoped, tag = 'scoped memory for tpu_custom_call.1']
    #allocation8 [shape = 'u8[16384]{0}', space=vmem, size = 0x4000, scoped, tag = 'output window, operand 0, single buffered']
    %9 = vsyncpa [#allocation4], 0
    %10 = vsyncpa [#allocation7], 0
    %11 = vsyncpa [#allocation5], 0
    // Predicated region
    $region2: #{tpu_custom_call.1} parent=1 // pred_check
      _
    $region3: #{tpu_custom_call.1} parent=1 // pred_check_branch
      %13 = sbr.rel (0) target = $region5
    $region4: #{tpu_custom_call.1} parent=1 // pred_region
      %15 = vsyncadd [#allocation4], 0
      %s17 = sshll.u32 %s0, 4
      %s18 = int_to_ptr.hbm [resolvable:$true] %s17
      %s19 = sshll.u32 [#allocation3], 4
      %s20 = int_to_ptr.vmem [resolvable:$true] %s19
      %22 = dma.hbm_to_vmem [thread:$0]  %s18, 512, %s20, [#allocation4]
    $region5: #{tpu_custom_call.1} parent=1 // pred_fallthru
      _
    // Predicated region
    $region6: #{tpu_custom_call.1} parent=1 // pred_check
      _
    $region7: #{tpu_custom_call.1} parent=1 // pred_check_branch
      %24 = sbr.rel (0) target = $region9
    $region8: #{tpu_custom_call.1} parent=1 // pred_region
      _
    $region9: #{tpu_custom_call.1} parent=1 // pred_fallthru
      _
    // Predicated region
    $region10: #{tpu_custom_call.1} parent=1 // pred_check
      _
    $region11: #{tpu_custom_call.1} parent=1 // pred_check_branch
      %26 = sbr.rel (0) target = $region13
    $region12: #{tpu_custom_call.1} parent=1 // pred_region
      _
    $region13: #{tpu_custom_call.1} parent=1 // pred_fallthru
      _
    // Predicated region
    $region14: #{tpu_custom_call.1} parent=1 // pred_check
      _
    $region15: #{tpu_custom_call.1} parent=1 // pred_check_branch
      %28 = sbr.rel (0) target = $region17
    $region16: #{tpu_custom_call.1} parent=1 // pred_region
      %30 = vsyncadd [#allocation7], 0
      %s31 = sshll.u32 %s3, 4
      %s32 = int_to_ptr.hbm [resolvable:$true] %s31
      %s33 = sshll.u32 [#allocation6], 4
      %s34 = int_to_ptr.vmem [resolvable:$true] %s33
      %39 = dma.hbm_to_vmem [thread:$0]  %s32, 1024, %s34, [#allocation7], 512, 512, 32
    $region17: #{tpu_custom_call.1} parent=1 // pred_fallthru
      _
    // Predicated region
    $region18: #{tpu_custom_call.1} parent=1 // pred_check
      _
    $region19: #{tpu_custom_call.1} parent=1 // pred_check_branch
      %41 = sbr.rel (0) target = $region21
    $region20: #{tpu_custom_call.1} parent=1 // pred_region
      %43 = dma.done [#allocation4], 512
    $region21: #{tpu_custom_call.1} parent=1 // pred_fallthru
      _
    // Predicated region
    $region22: #{tpu_custom_call.1} parent=1 // pred_check
      _
    $region23: #{tpu_custom_call.1} parent=1 // pred_check_branch
      %45 = sbr.rel (0) target = $region25
    $region24: #{tpu_custom_call.1} parent=1 // pred_region
      %47 = dma.done [#allocation7], 1024
    $region25: #{tpu_custom_call.1} parent=1 // pred_fallthru
      _
    %v48 = vld [vmem:[#allocation3] sm:$0xff]
    %v49 = vld [vmem:[#allocation3 + $0x8] sm:$0xff]
    %v50 = vld [vmem:[#allocation3 + $0x10] sm:$0xff]
    %v51 = vld [vmem:[#allocation3 + $0x18] sm:$0xff]
    %v52 = vld [vmem:[#allocation6] sm:$0xff]
    %v53 = vld [vmem:[#allocation6 + $0x8] sm:$0xff]
    %v54 = vld [vmem:[#allocation6 + $0x10] sm:$0xff]
    %v55 = vld [vmem:[#allocation6 + $0x18] sm:$0xff]
    %v56 = vld [vmem:[#allocation6 + $0x20] sm:$0x1]
    %v57 = vld [vmem:[#allocation6 + $0x28] sm:$0x1]
    %v58 = vld [vmem:[#allocation6 + $0x30] sm:$0x1]
    %v59 = vld [vmem:[#allocation6 + $0x38] sm:$0x1]
    %60 = vrot.lane.b32.xlu0 %v48, 17
    %v61 = vpop.permute.xlu0 %60
    %62 = vrot.lane.b32.xlu0 %v49, 17
    %v63 = vpop.permute.xlu0 %62
    %64 = vrot.lane.b32.xlu0 %v50, 17
    %v65 = vpop.permute.xlu0 %64
    %66 = vrot.lane.b32.xlu0 %v51, 17
    %v67 = vpop.permute.xlu0 %66
    %v68 = vlaneseq
    %v69 = vand.u32 %v68, 127
    %vm70 = vcmp.lt.s32.totalorder %v69, 17
    %v71 = vsel %vm70, %v65, %v67
    %v72 = vsel %vm70, %v63, %v65
    %v73 = vsel %vm70, %v61, %v63
    %v74 = vsel %vm70, %v67, %v61
    %v75 = vperm.slane %v52, 0
    %v76 = vperm.slane %v53, 0
    %v77 = vperm.slane %v54, 0
    %v78 = vperm.slane %v55, 0
    %v79 = vmul.f32 %v74, %v75
    %v80 = vmul.f32 %v73, %v76
    %v81 = vmul.f32 %v72, %v77
    %v82 = vmul.f32 %v71, %v78
    %83 = vst [vmem:[#allocation2] sm:$0xff] %v79
    %84 = vst [vmem:[#allocation2 + $0x8] sm:$0xff] %v80
    %85 = vst [vmem:[#allocation2 + $0x10] sm:$0xff] %v81
    %86 = vst [vmem:[#allocation2 + $0x18] sm:$0xff] %v82
    %87 = vrot.lane.b32.xlu0 %v48, 16
    %v88 = vpop.permute.xlu0 %87
    %89 = vrot.lane.b32.xlu0 %v49, 16
    %v90 = vpop.permute.xlu0 %89
    %91 = vrot.lane.b32.xlu0 %v50, 16
    %v92 = vpop.permute.xlu0 %91
    %93 = vrot.lane.b32.xlu0 %v51, 16
    %v94 = vpop.permute.xlu0 %93
    %vm95 = vcmp.lt.s32.totalorder %v69, 16
    %v96 = vsel %vm95, %v92, %v94
    %v97 = vsel %vm95, %v90, %v92
    %v98 = vsel %vm95, %v88, %v90
    %v99 = vsel %vm95, %v94, %v88
    %v100 = vperm.slane %v52, 1
    %v101 = vperm.slane %v53, 1
    %v102 = vperm.slane %v54, 1
    %v103 = vperm.slane %v55, 1
    %v104 = vmul.f32 %v99, %v100
    %v105 = vmul.f32 %v98, %v101
    %v106 = vmul.f32 %v97, %v102
    %v107 = vmul.f32 %v96, %v103
    %108 = vst [vmem:[#allocation2 + $0x20] sm:$0xff] %v104
    %109 = vst [vmem:[#allocation2 + $0x28] sm:$0xff] %v105
    %110 = vst [vmem:[#allocation2 + $0x30] sm:$0xff] %v106
    %111 = vst [vmem:[#allocation2 + $0x38] sm:$0xff] %v107
    %112 = vrot.lane.b32.xlu0 %v48, 15
    %v113 = vpop.permute.xlu0 %112
    %114 = vrot.lane.b32.xlu0 %v49, 15
    %v115 = vpop.permute.xlu0 %114
    %116 = vrot.lane.b32.xlu0 %v50, 15
    %v117 = vpop.permute.xlu0 %116
    %118 = vrot.lane.b32.xlu0 %v51, 15
    %v119 = vpop.permute.xlu0 %118
    %vm120 = vcmp.lt.s32.totalorder %v69, 15
    %v121 = vsel %vm120, %v117, %v119
    %v122 = vsel %vm120, %v115, %v117
    %v123 = vsel %vm120, %v113, %v115
    %v124 = vsel %vm120, %v119, %v113
    %v125 = vperm.slane %v52, 2
    %v126 = vperm.slane %v53, 2
    %v127 = vperm.slane %v54, 2
    %v128 = vperm.slane %v55, 2
    %v129 = vmul.f32 %v124, %v125
    %v130 = vmul.f32 %v123, %v126
    %v131 = vmul.f32 %v122, %v127
    %v132 = vmul.f32 %v121, %v128
    %133 = vst [vmem:[#allocation2 + $0x40] sm:$0xff] %v129
    %134 = vst [vmem:[#allocation2 + $0x48] sm:$0xff] %v130
    %135 = vst [vmem:[#allocation2 + $0x50] sm:$0xff] %v131
    %136 = vst [vmem:[#allocation2 + $0x58] sm:$0xff] %v132
    %137 = vrot.lane.b32.xlu0 %v48, 1
    %v138 = vpop.permute.xlu0 %137
    %139 = vrot.lane.b32.xlu0 %v49, 1
    %v140 = vpop.permute.xlu0 %139
    %141 = vrot.lane.b32.xlu0 %v50, 1
    %v142 = vpop.permute.xlu0 %141
    %143 = vrot.lane.b32.xlu0 %v51, 1
    %v144 = vpop.permute.xlu0 %143
    %vm145 = vcmp.lt.s32.totalorder %v69, 1
    %v146 = vsel %vm145, %v142, %v144
    %v147 = vsel %vm145, %v140, %v142
    %v148 = vsel %vm145, %v138, %v140
    %v149 = vsel %vm145, %v144, %v138
    %v150 = vperm.slane %v52, 3
    %v151 = vperm.slane %v53, 3
    %v152 = vperm.slane %v54, 3
    %v153 = vperm.slane %v55, 3
    %v154 = vmul.f32 %v149, %v150
    %v155 = vmul.f32 %v148, %v151
    %v156 = vmul.f32 %v147, %v152
    %v157 = vmul.f32 %v146, %v153
    %158 = vst [vmem:[#allocation2 + $0x60] sm:$0xff] %v154
    %159 = vst [vmem:[#allocation2 + $0x68] sm:$0xff] %v155
    %160 = vst [vmem:[#allocation2 + $0x70] sm:$0xff] %v156
    %161 = vst [vmem:[#allocation2 + $0x78] sm:$0xff] %v157
    %162 = vst [vmem:[#allocation2 + $0x80] sm:$0xff] %v48
    %163 = vst [vmem:[#allocation2 + $0x88] sm:$0xff] %v49
    %164 = vst [vmem:[#allocation2 + $0x90] sm:$0xff] %v50
    %165 = vst [vmem:[#allocation2 + $0x98] sm:$0xff] %v51
    %166 = vrot.lane.b32.xlu0 %v48, 127
    %v167 = vpop.permute.xlu0 %166
    %168 = vrot.lane.b32.xlu0 %v49, 127
    %v169 = vpop.permute.xlu0 %168
    %170 = vrot.lane.b32.xlu0 %v50, 127
    %v171 = vpop.permute.xlu0 %170
    %172 = vrot.lane.b32.xlu0 %v51, 127
    %v173 = vpop.permute.xlu0 %172
    %vm174 = vcmp.lt.s32.totalorder %v69, 127
    %v175 = vsel %vm174, %v171, %v173
    %v176 = vsel %vm174, %v169, %v171
    %v177 = vsel %vm174, %v167, %v169
    %v178 = vsel %vm174, %v173, %v167
    %v179 = vperm.slane %v52, 5
    %v180 = vperm.slane %v53, 5
    %v181 = vperm.slane %v54, 5
    %v182 = vperm.slane %v55, 5
    %v183 = vmul.f32 %v177, %v179
    %v184 = vmul.f32 %v176, %v180
    %v185 = vmul.f32 %v175, %v181
    %v186 = vmul.f32 %v178, %v182
    %187 = vst [vmem:[#allocation2 + $0xa0] sm:$0xff] %v183
    %188 = vst [vmem:[#allocation2 + $0xa8] sm:$0xff] %v184
    %189 = vst [vmem:[#allocation2 + $0xb0] sm:$0xff] %v185
    %190 = vst [vmem:[#allocation2 + $0xb8] sm:$0xff] %v186
    %191 = vrot.lane.b32.xlu0 %v48, 113
    %v192 = vpop.permute.xlu0 %191
    %193 = vrot.lane.b32.xlu0 %v49, 113
    %v194 = vpop.permute.xlu0 %193
    %195 = vrot.lane.b32.xlu0 %v50, 113
    %v196 = vpop.permute.xlu0 %195
    %197 = vrot.lane.b32.xlu0 %v51, 113
    %v198 = vpop.permute.xlu0 %197
    %vm199 = vcmp.lt.s32.totalorder %v69, 113
    %v200 = vsel %vm199, %v196, %v198
    %v201 = vsel %vm199, %v194, %v196
    %v202 = vsel %vm199, %v192, %v194
    %v203 = vsel %vm199, %v198, %v192
    %v204 = vperm.slane %v52, 6
    %v205 = vperm.slane %v53, 6
    %v206 = vperm.slane %v54, 6
    %v207 = vperm.slane %v55, 6
    %v208 = vmul.f32 %v202, %v204
    %v209 = vmul.f32 %v201, %v205
    %v210 = vmul.f32 %v200, %v206
    %v211 = vmul.f32 %v203, %v207
    %212 = vst [vmem:[#allocation2 + $0xc0] sm:$0xff] %v208
    %213 = vst [vmem:[#allocation2 + $0xc8] sm:$0xff] %v209
    %214 = vst [vmem:[#allocation2 + $0xd0] sm:$0xff] %v210
    %215 = vst [vmem:[#allocation2 + $0xd8] sm:$0xff] %v211
    %216 = vrot.lane.b32.xlu0 %v48, 112
    %v217 = vpop.permute.xlu0 %216
    %218 = vrot.lane.b32.xlu0 %v49, 112
    %v219 = vpop.permute.xlu0 %218
    %220 = vrot.lane.b32.xlu0 %v50, 112
    %v221 = vpop.permute.xlu0 %220
    %222 = vrot.lane.b32.xlu0 %v51, 112
    %v223 = vpop.permute.xlu0 %222
    %vm224 = vcmp.lt.s32.totalorder %v69, 112
    %v225 = vsel %vm224, %v221, %v223
    %v226 = vsel %vm224, %v219, %v221
    %v227 = vsel %vm224, %v217, %v219
    %v228 = vsel %vm224, %v223, %v217
    %v229 = vperm.slane %v52, 7
    %v230 = vperm.slane %v53, 7
    %v231 = vperm.slane %v54, 7
    %v232 = vperm.slane %v55, 7
    %v233 = vmul.f32 %v227, %v229
    %v234 = vmul.f32 %v226, %v230
    %v235 = vmul.f32 %v225, %v231
    %v236 = vmul.f32 %v228, %v232
    %237 = vst [vmem:[#allocation2 + $0xe0] sm:$0xff] %v233
    %238 = vst [vmem:[#allocation2 + $0xe8] sm:$0xff] %v234
    %239 = vst [vmem:[#allocation2 + $0xf0] sm:$0xff] %v235
    %240 = vst [vmem:[#allocation2 + $0xf8] sm:$0xff] %v236
    %241 = vrot.lane.b32.xlu0 %v48, 111
    %v242 = vpop.permute.xlu0 %241
    %243 = vrot.lane.b32.xlu0 %v49, 111
    %v244 = vpop.permute.xlu0 %243
    %245 = vrot.lane.b32.xlu0 %v50, 111
    %v246 = vpop.permute.xlu0 %245
    %247 = vrot.lane.b32.xlu0 %v51, 111
    %v248 = vpop.permute.xlu0 %247
    %vm249 = vcmp.lt.s32.totalorder %v69, 111
    %v250 = vsel %vm249, %v246, %v248
    %v251 = vsel %vm249, %v244, %v246
    %v252 = vsel %vm249, %v242, %v244
    %v253 = vsel %vm249, %v248, %v242
    %v254 = vperm.slane %v56, 0
    %v255 = vperm.slane %v57, 0
    %v256 = vperm.slane %v58, 0
    %v257 = vperm.slane %v59, 0
    %v258 = vmul.f32 %v252, %v254
    %v259 = vmul.f32 %v251, %v255
    %v260 = vmul.f32 %v250, %v256
    %v261 = vmul.f32 %v253, %v257
    %262 = vst [vmem:[#allocation2 + $0x100] sm:$0xff] %v258
    %263 = vst [vmem:[#allocation2 + $0x108] sm:$0xff] %v259
    %264 = vst [vmem:[#allocation2 + $0x110] sm:$0xff] %v260
    %265 = vst [vmem:[#allocation2 + $0x118] sm:$0xff] %v261
    %v266 = vld [vmem:[%s1] sm:$0xff]
    %v267 = vld [vmem:[#allocation2] sm:$0xff]
    %v268 = vld [vmem:[#allocation2 + $0x8] sm:$0xff]
    %v269 = vld [vmem:[#allocation2 + $0x10] sm:$0xff]
    %v270 = vld [vmem:[#allocation2 + $0x18] sm:$0xff]
    %v271 = vld [vmem:[#allocation2 + $0x20] sm:$0xff]
    %v272 = vld [vmem:[#allocation2 + $0x28] sm:$0xff]
    %v273 = vld [vmem:[#allocation2 + $0x30] sm:$0xff]
    %v274 = vld [vmem:[#allocation2 + $0x38] sm:$0xff]
    %v275 = vld [vmem:[#allocation2 + $0x40] sm:$0xff]
    %v276 = vld [vmem:[#allocation2 + $0x48] sm:$0xff]
    %v277 = vld [vmem:[#allocation2 + $0x50] sm:$0xff]
    %v278 = vld [vmem:[#allocation2 + $0x58] sm:$0xff]
    %v279 = vld [vmem:[#allocation2 + $0x60] sm:$0xff]
    %v280 = vld [vmem:[#allocation2 + $0x68] sm:$0xff]
    %v281 = vld [vmem:[#allocation2 + $0x70] sm:$0xff]
    %v282 = vld [vmem:[#allocation2 + $0x78] sm:$0xff]
    %v283 = vld [vmem:[#allocation2 + $0x80] sm:$0xff]
    %v284 = vld [vmem:[#allocation2 + $0x88] sm:$0xff]
    %v285 = vld [vmem:[#allocation2 + $0x90] sm:$0xff]
    %v286 = vld [vmem:[#allocation2 + $0x98] sm:$0xff]
    %v287 = vld [vmem:[#allocation2 + $0xa0] sm:$0xff]
    %v288 = vld [vmem:[#allocation2 + $0xa8] sm:$0xff]
    %v289 = vld [vmem:[#allocation2 + $0xb0] sm:$0xff]
    %v290 = vld [vmem:[#allocation2 + $0xb8] sm:$0xff]
    %v291 = vld [vmem:[#allocation2 + $0xc0] sm:$0xff]
    %v292 = vld [vmem:[#allocation2 + $0xc8] sm:$0xff]
    %v293 = vld [vmem:[#allocation2 + $0xd0] sm:$0xff]
    %v294 = vld [vmem:[#allocation2 + $0xd8] sm:$0xff]
    %v295 = vld [vmem:[#allocation2 + $0xe0] sm:$0xff]
    %v296 = vld [vmem:[#allocation2 + $0xe8] sm:$0xff]
    %v297 = vld [vmem:[#allocation2 + $0xf0] sm:$0xff]
    %v298 = vld [vmem:[#allocation2 + $0xf8] sm:$0xff]
    %v299 = vld [vmem:[#allocation2 + $0x100] sm:$0xff]
    %v300 = vld [vmem:[#allocation2 + $0x108] sm:$0xff]
    %v301 = vld [vmem:[#allocation2 + $0x110] sm:$0xff]
    %v302 = vld [vmem:[#allocation2 + $0x118] sm:$0xff]
    %v303 = vld [vmem:[%s2] sm:$0xff]
    %305 = vset.pattern.permute.xlu0 0
    %306 = vperm.xlu0 %305, %v303
    %v307 = vpop.permute.xlu0 %306
    %vm309 = vcmask 588800
    %v311 = vsel %vm309, %v266, 0
    %313 = vmatpush.msra.mxu0 0.0
    %314 = vmatpush.msra.mxu0 0.0
    %315 = vmatpush.msra.mxu0 0.0
    %316 = vmatpush.msra.mxu0 0.0
    %317 = vmatpush.msra.mxu0 0.0
    %318 = vmatpush.msra.mxu0 0.0
    %319 = vmatpush.msra.mxu0 0.0
    %320 = vmatpush.msra.mxu0 %v299
    %321 = vmatpush.msra.mxu0 %v295
    %322 = vmatpush.msra.mxu0 %v291
    %323 = vmatpush.msra.mxu0 %v287
    %324 = vmatpush.msra.mxu0 %v283
    %325 = vmatpush.msra.mxu0 %v279
    %326 = vmatpush.msra.mxu0 %v275
    %327 = vmatpush.msra.mxu0 %v271
    %328 = vmatpush.msra.mxu0 %v267
    %329 = vmatmul.f32.gmra.mxu0 %v311
    %v330 = vpop.f32.mrf.mxu0
    %v331 = vadd.f32 %v307, %v330
    %332 = vdwg.mxu0
    %333 = vmatpush.msra.mxu0 0.0
    %334 = vmatpush.msra.mxu0 0.0
    %335 = vmatpush.msra.mxu0 0.0
    %336 = vmatpush.msra.mxu0 0.0
    %337 = vmatpush.msra.mxu0 0.0
    %338 = vmatpush.msra.mxu0 0.0
    %339 = vmatpush.msra.mxu0 0.0
    %340 = vmatpush.msra.mxu0 %v300
    %341 = vmatpush.msra.mxu0 %v296
    %342 = vmatpush.msra.mxu0 %v292
    %343 = vmatpush.msra.mxu0 %v288
    %344 = vmatpush.msra.mxu0 %v284
    %345 = vmatpush.msra.mxu0 %v280
    %346 = vmatpush.msra.mxu0 %v276
    %347 = vmatpush.msra.mxu0 %v272
    %348 = vmatpush.msra.mxu0 %v268
    %349 = vmatmul.f32.gmra.mxu0 %v311
    %v350 = vpop.f32.mrf.mxu0
    %v351 = vadd.f32 %v307, %v350
    %352 = vdwg.mxu0
    %353 = vmatpush.msra.mxu0 0.0
    %354 = vmatpush.msra.mxu0 0.0
    %355 = vmatpush.msra.mxu0 0.0
    %356 = vmatpush.msra.mxu0 0.0
    %357 = vmatpush.msra.mxu0 0.0
    %358 = vmatpush.msra.mxu0 0.0
    %359 = vmatpush.msra.mxu0 0.0
    %360 = vmatpush.msra.mxu0 %v301
    %361 = vmatpush.msra.mxu0 %v297
    %362 = vmatpush.msra.mxu0 %v293
    %363 = vmatpush.msra.mxu0 %v289
    %364 = vmatpush.msra.mxu0 %v285
    %365 = vmatpush.msra.mxu0 %v281
    %366 = vmatpush.msra.mxu0 %v277
    %367 = vmatpush.msra.mxu0 %v273
    %368 = vmatpush.msra.mxu0 %v269
    %369 = vmatmul.f32.gmra.mxu0 %v311
    %v370 = vpop.f32.mrf.mxu0
    %v371 = vadd.f32 %v307, %v370
    %372 = vdwg.mxu0
    %373 = vmatpush.msra.mxu0 0.0
    %374 = vmatpush.msra.mxu0 0.0
    %375 = vmatpush.msra.mxu0 0.0
    %376 = vmatpush.msra.mxu0 0.0
    %377 = vmatpush.msra.mxu0 0.0
    %378 = vmatpush.msra.mxu0 0.0
    %379 = vmatpush.msra.mxu0 0.0
    %380 = vmatpush.msra.mxu0 %v302
    %381 = vmatpush.msra.mxu0 %v298
    %382 = vmatpush.msra.mxu0 %v294
    %383 = vmatpush.msra.mxu0 %v290
    %384 = vmatpush.msra.mxu0 %v286
    %385 = vmatpush.msra.mxu0 %v282
    %386 = vmatpush.msra.mxu0 %v278
    %387 = vmatpush.msra.mxu0 %v274
    %388 = vmatpush.msra.mxu0 %v270
    %389 = vmatmul.f32.gmra.mxu0 %v311
    %v390 = vpop.f32.mrf.mxu0
    %v391 = vadd.f32 %v307, %v390
    %392 = vdwg.mxu0
    %v393 = vmin.f32 %v331, 20.0
    %v394 = vmin.f32 %v351, 20.0
    %v395 = vmin.f32 %v371, 20.0
    %v396 = vmin.f32 %v391, 20.0
    %v397 = vmul.f32 %v393, 1.442695
    %v398 = vpow.pop %v397
    %v399 = vmul.f32 %v394, 1.442695
    %v400 = vpow.pop %v399
    %v401 = vmul.f32 %v395, 1.442695
    %v402 = vpow.pop %v401
    %v403 = vmul.f32 %v396, 1.442695
    %v404 = vpow.pop %v403
    %v405 = vadd.f32 %v398, 2.0
    %v406 = vadd.f32 %v400, 2.0
    %v407 = vadd.f32 %v402, 2.0
    %v408 = vadd.f32 %v404, 2.0
    %v409 = vmul.f32 %v398, %v405
    %v410 = vmul.f32 %v400, %v406
    %v411 = vmul.f32 %v402, %v407
    %v412 = vmul.f32 %v404, %v408
    %vm413 = vcmp.gt.f32.partialorder %v331, 20.0
    %vm414 = vcmp.gt.f32.partialorder %v351, 20.0
    %vm415 = vcmp.gt.f32.partialorder %v371, 20.0
    %vm416 = vcmp.gt.f32.partialorder %v391, 20.0
    %v417 = vmul.f32 %v331, %v409
    %v418 = vmul.f32 %v351, %v410
    %v419 = vmul.f32 %v371, %v411
    %v420 = vmul.f32 %v391, %v412
    %v421 = vadd.f32 %v409, 2.0
    %v422 = vadd.f32 %v410, 2.0
    %v423 = vadd.f32 %v411, 2.0
    %v424 = vadd.f32 %v412, 2.0
    %v425 = vrcp.pop %v421
    %v426 = vmul.f32 %v421, %v425
    %v427 = vsub.f32 1.0, %v426
    %v428 = vmul.f32 %v425, %v427
    %v429 = vadd.f32 %v425, %v428
    %vm430 = vweird.f32 %v421
    %vm431 = vweird.f32 %v425
    %vm432 = vmor %vm430, %vm431
    %v433 = vsel %vm432, %v425, %v429
    %v434 = vand.u32 2147483647, %v421
    %vm435 = vcmp.eq.f32.partialorder %v434, 8.507059e+37
    %v436 = vand.u32 %v421, 2147483648
    %v437 = vor.u32 1.1754944e-38, %v436
    %v438 = vsel %vm435, %v437, %v433
    %v439 = vmul.f32 %v417, %v438
    %v440 = vrcp.pop %v422
    %v441 = vmul.f32 %v422, %v440
    %v442 = vsub.f32 1.0, %v441
    %v443 = vmul.f32 %v440, %v442
    %v444 = vadd.f32 %v440, %v443
    %vm445 = vweird.f32 %v422
    %vm446 = vweird.f32 %v440
    %vm447 = vmor %vm445, %vm446
    %v448 = vsel %vm447, %v440, %v444
    %v449 = vand.u32 2147483647, %v422
    %vm450 = vcmp.eq.f32.partialorder %v449, 8.507059e+37
    %v451 = vand.u32 %v422, 2147483648
    %v452 = vor.u32 1.1754944e-38, %v451
    %v453 = vsel %vm450, %v452, %v448
    %v454 = vmul.f32 %v418, %v453
    %v455 = vrcp.pop %v423
    %v456 = vmul.f32 %v423, %v455
    %v457 = vsub.f32 1.0, %v456
    %v458 = vmul.f32 %v455, %v457
    %v459 = vadd.f32 %v455, %v458
    %vm460 = vweird.f32 %v423
    %vm461 = vweird.f32 %v455
    %vm462 = vmor %vm460, %vm461
    %v463 = vsel %vm462, %v455, %v459
    %v464 = vand.u32 2147483647, %v423
    %vm465 = vcmp.eq.f32.partialorder %v464, 8.507059e+37
    %v466 = vand.u32 %v423, 2147483648
    %v467 = vor.u32 1.1754944e-38, %v466
    %v468 = vsel %vm465, %v467, %v463
    %v469 = vmul.f32 %v419, %v468
    %v470 = vrcp.pop %v424
    %v471 = vmul.f32 %v424, %v470
    %v472 = vsub.f32 1.0, %v471
    %v473 = vmul.f32 %v470, %v472
    %v474 = vadd.f32 %v470, %v473
    %vm475 = vweird.f32 %v424
    %vm476 = vweird.f32 %v470
    %vm477 = vmor %vm475, %vm476
    %v478 = vsel %vm477, %v470, %v474
    %v479 = vand.u32 2147483647, %v424
    %vm480 = vcmp.eq.f32.partialorder %v479, 8.507059e+37
    %v481 = vand.u32 %v424, 2147483648
    %v482 = vor.u32 1.1754944e-38, %v481
    %v483 = vsel %vm480, %v482, %v478
    %v484 = vmul.f32 %v420, %v483
    %v485 = vsel %vm413, %v331, %v439
    %v486 = vsel %vm414, %v351, %v454
    %v487 = vsel %vm415, %v371, %v469
    %v488 = vsel %vm416, %v391, %v484
    %489 = vst [vmem:[#allocation8] sm:$0xff] %v485
    %490 = vst [vmem:[#allocation8 + $0x8] sm:$0xff] %v486
    %491 = vst [vmem:[#allocation8 + $0x10] sm:$0xff] %v487
    %492 = vst [vmem:[#allocation8 + $0x18] sm:$0xff] %v488
    // Predicated region
    $region26: #{tpu_custom_call.1} parent=1 // pred_check
      _
    $region27: #{tpu_custom_call.1} parent=1 // pred_check_branch
      %494 = sbr.rel (0) target = $region29
    $region28: #{tpu_custom_call.1} parent=1 // pred_region
      %496 = vsyncadd [#allocation5], 0
      %s498 = sshll.u32 [#allocation8], 4
      %s499 = int_to_ptr.vmem [resolvable:$true] %s498
      %s500 = sshll.u32 %s4, 4
      %s501 = int_to_ptr.hbm [resolvable:$true] %s500
      %503 = dma.vmem_to_hbm [thread:$0]  %s499, 512, %s501, [#allocation5]
    $region29: #{tpu_custom_call.1} parent=1 // pred_fallthru
      _
    // Predicated region
    $region30: #{tpu_custom_call.1} parent=1 // pred_check
      _
    $region31: #{tpu_custom_call.1} parent=1 // pred_check_branch
      %505 = sbr.rel (0) target = $region33
    $region32: #{tpu_custom_call.1} parent=1 // pred_region
      %507 = dma.done [#allocation5], 512
    $region33: #{tpu_custom_call.1} parent=1 // pred_fallthru
      _
    %508 = vsyncpa [#allocation4], 1
    %509 = vsyncpa [#allocation7], 1
    %510 = vsyncpa [#allocation5], 1

</llo_original>
